<compile_context>
chip_gen: v7x
topology: tpu7x:2x2x1
jax: 0.10.0
libtpu: 0.0.40
codegen_flags: <defaults>
</compile_context>

<pallas_src>
import jax
import jax.numpy as jnp
from jax.experimental import pallas as pl
from jax.experimental.pallas import tpu as pltpu

_LANE = 128
_SUBLANE = 8
_TILE_BYTES = 4 * 1024 * 1024          # per-buffer tile budget (~4 MiB)
_VMEM_LIMIT = 32 * 1024 * 1024         # 2x(in)+2x(out) tiles + params << 32 MiB


def _round_up(x, m):
    return (x + m - 1) // m * m


def _cdiv(a, b):
    return (a + b - 1) // b


def _plan_tiles(rows, cols, elem_bytes, budget_bytes=_TILE_BYTES):
    """Pick (tile_rows, tile_cols) that satisfy the (8,128)/full-dim layout rule,
    stay within the per-buffer byte budget, and give the grid >= 2 blocks."""
    col_splittable = (cols % _LANE == 0) and (cols > _LANE)

    # ---- row tile: multiple of 8, or the full row extent (exempt) ----------
    nominal_cols = min(cols, 4096) if col_splittable else cols
    budget_rows = max(
        _SUBLANE,
        (budget_bytes // max(1, nominal_cols * elem_bytes)) // _SUBLANE * _SUBLANE,
    )
    tile_rows = rows if rows <= budget_rows else budget_rows

    # ---- column tile: multiple of 128 (balanced), or the full width ---------
    if col_splittable:
        # Rebalance columns against the final row tile (matters when rows is small).
        budget_cols = max(
            _LANE,
            (budget_bytes // max(1, tile_rows * elem_bytes)) // _LANE * _LANE,
        )
        n_col_blocks = max(1, _cdiv(cols, budget_cols))
        # v7x megacore: ensure >= 2 grid blocks so both TensorCores get work.
        if n_col_blocks == 1 and _cdiv(rows, tile_rows) == 1:
            n_col_blocks = 2
        tile_cols = min(cols, _round_up(_cdiv(cols, n_col_blocks), _LANE))
    else:
        tile_cols = cols  # full width -> exempt from the 128-divisibility rule
        if _cdiv(rows, tile_rows) == 1 and rows > _SUBLANE:
            # Split rows instead so both v7x TensorCores get a block.
            tile_rows = max(_SUBLANE, _round_up(_cdiv(rows, 2), _SUBLANE))

    return tile_rows, tile_cols


def _richards_kernel(x_ref, hb_ref, qn_ref, o_ref):
    # x_ref / o_ref: (TILE_R, TILE_C) ; hb_ref / qn_ref: (TILE_R, 1) float32
    x = jnp.clip(x_ref[...].astype(jnp.float32), 0.0, 1.0)
    inner = jnp.exp(qn_ref[...] * x)                       # EUP: exp
    # sigmoid(2*hb*inner) via tanh identity -> EUP: tanh, cheap VALU fma.
    o_ref[...] = (0.5 + 0.5 * jnp.tanh(hb_ref[...] * inner)).astype(o_ref.dtype)


@jax.jit
def richards_sigmoid(x, A, Q, mu):
    """x: (N, C, H, W); A, Q, mu: (units,) with units == C or units == 1."""
    N, C, H, W = x.shape
    HW = H * W
    rows = N * C
    elem_bytes = x.dtype.itemsize

    A32 = A.reshape(-1).astype(jnp.float32)
    Q32 = Q.reshape(-1).astype(jnp.float32)
    mu32 = mu.reshape(-1).astype(jnp.float32)

    # Fold mu, pre-halve the amplitude and pre-negate Q (no in-kernel negation):
    #   A*exp(-Q*(x-mu)) = (A*exp(Q*mu)) * exp(-Q*x);  sigmoid(z) = 0.5+0.5*tanh(z/2)
    # Note: if Q*mu overflows exp(), the result still saturates to 1 exactly like
    # the unfused form does, so no guard is needed for x in [0,1].
    hb = (0.5 * A32 * jnp.exp(Q32 * mu32))   # (units,) half folded amplitude
    qn = -Q32                                # (units,) negated rate

    def per_row(p):
        p = jnp.broadcast_to(p, (C,))                 # units == 1 or units == C
        return jnp.tile(p, (N,)).reshape(rows, 1)     # (N*C, 1) float32

    hb_r, qn_r = per_row(hb), per_row(qn)
    x2d = x.reshape(rows, HW)

    tile_rows, tile_cols = _plan_tiles(rows, HW, elem_bytes)
    grid = (_cdiv(rows, tile_rows), _cdiv(HW, tile_cols))

    x_spec = pl.BlockSpec((tile_rows, tile_cols), lambda i, j: (i, j))
    p_spec = pl.BlockSpec((tile_rows, 1), lambda i, j: (i, 0))

    elems = rows * HW
    cost = pl.CostEstimate(
        flops=6 * elems,
        transcendentals=2 * elems,
        bytes_accessed=2 * elems * elem_bytes + 2 * rows * 4,
    )

    out2d = pl.pallas_call(
        _richards_kernel,
        out_shape=jax.ShapeDtypeStruct((rows, HW), x.dtype),
        grid_spec=pltpu.PrefetchScalarGridSpec(
            num_scalar_prefetch=0,
            grid=grid,
            in_specs=[x_spec, p_spec, p_spec],
            out_specs=x_spec,
        ),
        compiler_params=pltpu.CompilerParams(
            dimension_semantics=("parallel", "parallel"),
            vmem_limit_bytes=_VMEM_LIMIT,
        ),
        cost_estimate=cost,
    )(x2d, hb_r, qn_r)

    return out2d.reshape(N, C, H, W)


def _reference(x, A, Q, mu):
    x = jnp.clip(x, 0.0, 1.0)
    A = A.reshape(1, -1, 1, 1)
    Q = Q.reshape(1, -1, 1, 1)
    mu = mu.reshape(1, -1, 1, 1)
    return 1.0 / (1.0 + jnp.exp(-A * jnp.exp(-Q * (x - mu))))


if __name__ == "__main__":
    key = jax.random.PRNGKey(0)
    kx, ka, kq, km = jax.random.split(key, 4)

    N, C, H, W = 2, 4, 16, 16
    units = C  # per-channel Richards parameters (units must equal C or 1)

    x = jax.random.normal(kx, (N, C, H, W), dtype=jnp.float32)
    # Deterministic "torch.rand(units).abs_()" analogue: uniform [0,1).
    A = jnp.abs(jax.random.uniform(ka, (units,), dtype=jnp.float32))
    Q = jnp.abs(jax.random.uniform(kq, (units,), dtype=jnp.float32))
    mu = jnp.abs(jax.random.uniform(km, (units,), dtype=jnp.float32))

    out = jax.block_until_ready(richards_sigmoid(x, A, Q, mu))
    ref = _reference(x, A, Q, mu)

    assert out.shape == (N, C, H, W)
    # No approx reciprocal anymore -> tight tolerance.
    assert jnp.allclose(out, ref, atol=1e-5, rtol=1e-5), "mismatch vs reference"

    print("KERNEL_OK")
</pallas_src>

<mosaic_0001>
module attributes {stable_mosaic.version = 11 : i64} {
  func.func @_richards_kernel(%arg0: i32, %arg1: i32, %arg2: memref<8x128xf32, #tpu.memory_space<vmem>>, %arg3: memref<8x1xf32, #tpu.memory_space<vmem>>, %arg4: memref<8x1xf32, #tpu.memory_space<vmem>>, %arg5: memref<8x128xf32, #tpu.memory_space<vmem>>) attributes {dimension_semantics = [#tpu.dimension_semantics<parallel>, #tpu.dimension_semantics<parallel>], iteration_bounds = array<i64: 1, 2>, scalar_prefetch = 0 : i64, scratch_operands = 0 : i64, tpu.core_type = #tpu.core_type<tc>, window_params = [{transform_indices = @transform_0, window_bounds = array<i64: 8, 128>}, {transform_indices = @transform_1, window_bounds = array<i64: 8, 1>}, {transform_indices = @transform_2, window_bounds = array<i64: 8, 1>}, {transform_indices = @transform_3, window_bounds = array<i64: 8, 128>}]} {
    %c0 = arith.constant 0 : index
    %c0_0 = arith.constant 0 : index
    %0 = vector.load %arg2[%c0, %c0_0] : memref<8x128xf32, #tpu.memory_space<vmem>>, vector<8x128xf32>
    %cst = arith.constant 0.000000e+00 : f32
    %cst_1 = arith.constant 1.000000e+00 : f32
    %1 = vector.broadcast %cst : f32 to vector<8x128xf32>
    %2 = arith.maximumf %1, %0 : vector<8x128xf32>
    %3 = vector.broadcast %cst_1 : f32 to vector<8x128xf32>
    %4 = arith.minimumf %3, %2 : vector<8x128xf32>
    %c0_2 = arith.constant 0 : index
    %c0_3 = arith.constant 0 : index
    %5 = vector.load %arg4[%c0_2, %c0_3] : memref<8x1xf32, #tpu.memory_space<vmem>>, vector<8x1xf32>
    %6 = vector.broadcast %5 : vector<8x1xf32> to vector<8x128xf32>
    %7 = arith.mulf %6, %4 : vector<8x128xf32>
    %8 = math.exp %7 : vector<8x128xf32>
    %c0_4 = arith.constant 0 : index
    %c0_5 = arith.constant 0 : index
    %9 = vector.load %arg3[%c0_4, %c0_5] : memref<8x1xf32, #tpu.memory_space<vmem>>, vector<8x1xf32>
    %10 = vector.broadcast %9 : vector<8x1xf32> to vector<8x128xf32>
    %11 = arith.mulf %10, %8 : vector<8x128xf32>
    %12 = math.tanh %11 : vector<8x128xf32>
    %cst_6 = arith.constant 5.000000e-01 : f32
    %13 = vector.broadcast %cst_6 : f32 to vector<8x128xf32>
    %14 = arith.mulf %13, %12 : vector<8x128xf32>
    %cst_7 = arith.constant 5.000000e-01 : f32
    %15 = vector.broadcast %cst_7 : f32 to vector<8x128xf32>
    %16 = arith.addf %15, %14 : vector<8x128xf32>
    %c0_8 = arith.constant 0 : index
    %c0_9 = arith.constant 0 : index
    %17 = vector.load %arg5[%c0_8, %c0_9] : memref<8x128xf32, #tpu.memory_space<vmem>>, vector<8x128xf32>
    tpu.vector_store %arg5[%c0_8, %c0_9], %16 {strides = array<i32>} : memref<8x128xf32, #tpu.memory_space<vmem>>, vector<8x128xf32>,
    return
  }
  func.func @transform_0(%arg0: i32, %arg1: i32) -> (i32, i32) {
    %c0_i32 = arith.constant 0 : i32
    return %arg0, %arg1 : i32, i32
  }
  func.func @transform_1(%arg0: i32, %arg1: i32) -> (i32, i32) {
    %c0_i32 = arith.constant 0 : i32
    %c0_i32_0 = arith.constant 0 : i32
    return %arg0, %c0_i32 : i32, i32
  }
  func.func @transform_2(%arg0: i32, %arg1: i32) -> (i32, i32) {
    %c0_i32 = arith.constant 0 : i32
    %c0_i32_0 = arith.constant 0 : i32
    return %arg0, %c0_i32 : i32, i32
  }
  func.func @transform_3(%arg0: i32, %arg1: i32) -> (i32, i32) {
    %c0_i32 = arith.constant 0 : i32
    return %arg0, %arg1 : i32, i32
  }
}

</mosaic_0001>

<llo_original>
// kernel: tile.18
$region0: #{tile.18}
  #allocation0 [shape = 's32[1]{0}', space=sflag, size = 0x4, scoped, tag = 'scoped memory for tile.18']
  %s0 = inlined_call_operand.vmem [shape: f32[4], index: 0, kind: input, shape index: {}]
  %s1 = inlined_call_operand.vmem [shape: f32[2,4], index: 1, kind: output, shape index: {}]
  // Predicated region
  $region2: #{tile.18} parent=0 // pred_check
    _
  $region3: #{tile.18} parent=0 // pred_check_branch
    %3 = sbr.rel (0) target = $region5
  $region4: #{tile.18} parent=0 // pred_region
    _
  $region5: #{tile.18} parent=0 // pred_fallthru
    _
  %v4 = vld [vmem:[%s0] ss:$0 sm:$0xff]
  %5 = vst [vmem:[%s1] sm:$0x3] %v4

// kernel: tile.0
$region0: #{tile.0}
  %s0 = inlined_call_operand.vmem [shape: f32[2,4], index: 0, kind: input, shape index: {}]
  %s1 = inlined_call_operand.vmem [shape: f32[8,1], index: 1, kind: output, shape index: {}]
  $region1: #{tile.0} parent=0
    #allocation0 [shape = 'u8[4096]{0}', space=vmem, size = 0x1000, scoped, tag = 'scoped mem for input reshape']
    %s3 = sshllo.u32 0, 2
    %v4 = vld [vmem:[%s0] sm:%s3]
    %5 = vst [vmem:[#allocation0] sm:%s3] %v4
    %v6 = vld [vmem:[#allocation0] sm:$0x3]
    %vm7 = vcmask 7168
    %8 = vst.msk [vmem:[%s1] ss:$4 sm:$0x3] %vm7, %v6
    %v9 = vld [vmem:[#allocation0] sm:$0x3]
    %10 = vrot.lane.b32.xlu0 %v9, 127
    %v11 = vpop.permute.xlu0 %10
    %vm12 = vcmask 7168
    %s13 = scalar_lea.vmem %s1, 1
    %14 = vst.msk [vmem:[%s13] ss:$4 sm:$0x3] %vm12, %v11
    %v15 = vld [vmem:[#allocation0] sm:$0x3]
    %16 = vrot.lane.b32.xlu0 %v15, 126
    %v17 = vpop.permute.xlu0 %16
    %vm18 = vcmask 7168
    %s19 = scalar_lea.vmem %s1, 2
    %20 = vst.msk [vmem:[%s19] ss:$4 sm:$0x3] %vm18, %v17
    %v21 = vld [vmem:[#allocation0] sm:$0x3]
    %22 = vrot.lane.b32.xlu0 %v21, 125
    %v23 = vpop.permute.xlu0 %22
    %vm24 = vcmask 7168
    %s25 = scalar_lea.vmem %s1, 3
    %26 = vst.msk [vmem:[%s25] ss:$4 sm:$0x3] %vm24, %v23

// kernel: richards_sigmoid.1
$region0: #{richards_sigmoid.1}
  #allocation0 [shape = 'u32[]', space=smem, size = 0x4, offset = 0x4, fixed_abs, tag = 'smem constant byte address 0x4 - core index']
  #allocation1 [shape = 'u32[144,128]{1,0:T(1,128)}', space=vmem, size = 0x12000, scoped, tag = 'internal scratch']
  %s0 = inlined_call_operand.vmem [shape: f32[8,256], index: 0, kind: input, shape index: {}]
  %s1 = inlined_call_operand.vmem [shape: f32[8,1], index: 1, kind: input, shape index: {}]
  %s2 = inlined_call_operand.vmem [shape: f32[8,1], index: 2, kind: input, shape index: {}]
  %s3 = inlined_call_operand.vmem [shape: f32[8,256], index: 3, kind: output, shape index: {}]
  %s4 = sld [smem:[#allocation0]]
  $region45: #{richards_sigmoid.1} parent=0
    _
  %s6 = ssub.s32 1, %s4
  %s7 = scalar_select 0, %s6, %s4
  loop: start=0, step=1, limit=4
  $region2: #{richards_sigmoid.1} parent=0 // loop_pre_header
    _
  $region3: #{richards_sigmoid.1} parent=0 // loop_header
    %s9 = sphi 0, %s13
    %p10 = scmp.ge.s32.totalorder %s9, 4
    %s16 = sphi 0, %s28
    %s17 = sphi 0, %s24
    %s18 = sphi 0, %s16
    %s19 = sphi 0, %s17
    %s20 = sphi 0, %s18
    %s21 = sphi 0, %s19
    %s33 = sphi 0, %s35
    %s36 = sphi 0, %s33
    %s37 = sphi 0, %s36
    %s53 = sphi 0, %s37
    %s59 = sphi 0, %s61
    %s62 = sphi 0, %s59
    %s63 = sphi 0, %s62
    %s79 = sphi 0, %s63
    %s85 = sphi 0, %s87
    %s88 = sphi 0, %s85
    %s89 = sphi 0, %s88
    %s105 = sphi 0, %s89
    %s113 = sphi 0, %s115
    %s116 = sphi 0, %s113
    %s117 = sphi 0, %s116
    %s133 = sphi 0, %s117
  $region4: #{richards_sigmoid.1} parent=0 // loop_header_branch
    %12 = sbr.rel (%p10) target = $region8
  $region5: #{richards_sigmoid.1} parent=0 // loop_body
    %s14 = ssub.s32 %s9, 1
    %s15 = ssub.s32 %s9, 2
    %s22 = sadd.s32 1, %s17
    %p23 = scmp.ge.s32.totalorder %s22, 2
    %s24 = scalar_select %p23, 0, %s22
    %s25 = sadd.s32 1, %s16
    %s26 = scalar_select %p23, %s25, %s16
    %p27 = scmp.ge.s32.totalorder %s26, 1
    %s28 = scalar_select %p27, 0, %s26
    %s29 = ssub.s32 %s16, %s28
    %s30 = ssub.s32 %s17, %s24
    %s31 = sor.u32 %s29, %s30
    %p32 = scmp.eq.s32.totalorder %s31, 0
    %s34 = sadd.s32 %s33, 1
    %s35 = scalar_select %p32, %s33, %s34
    %p38 = pneg %p32
    %p39 = scmp.eq.s32.totalorder %s9, 1
    %p40 = por %p38, %p39
    %p41 = scmp.ne.s32.totalorder %s33, %s36
    %p42 = scmp.eq.s32.totalorder %s9, 0
    %p43 = por %p41, %p42
    %p44 = scmp.ne.s32.totalorder %s33, %s36
    %p45 = scmp.eq.s32.totalorder %s14, 1
    %p46 = por %p44, %p45
    %p47 = scmp.ne.s32.totalorder %s36, %s37
    %p48 = scmp.eq.s32.totalorder %s14, 0
    %p49 = por %p47, %p48
    %p50 = scmp.ne.s32.totalorder %s36, %s37
    %p51 = scmp.eq.s32.totalorder %s15, 1
    %p52 = por %p50, %p51
    %p54 = scmp.ne.s32.totalorder %s37, %s53
    %p55 = scmp.eq.s32.totalorder %s15, 0
    %p56 = por %p54, %p55
    %s57 = ssub.s32 %s16, %s28
    %p58 = scmp.eq.s32.totalorder %s57, 0
    %s60 = sadd.s32 %s59, 1
    %s61 = scalar_select %p58, %s59, %s60
    %p64 = pneg %p58
    %p65 = scmp.eq.s32.totalorder %s9, 1
    %p66 = por %p64, %p65
    %p67 = scmp.ne.s32.totalorder %s59, %s62
    %p68 = scmp.eq.s32.totalorder %s9, 0
    %p69 = por %p67, %p68
    %p70 = scmp.ne.s32.totalorder %s59, %s62
    %p71 = scmp.eq.s32.totalorder %s14, 1
    %p72 = por %p70, %p71
    %p73 = scmp.ne.s32.totalorder %s62, %s63
    %p74 = scmp.eq.s32.totalorder %s14, 0
    %p75 = por %p73, %p74
    %p76 = scmp.ne.s32.totalorder %s62, %s63
    %p77 = scmp.eq.s32.totalorder %s15, 1
    %p78 = por %p76, %p77
    %p80 = scmp.ne.s32.totalorder %s63, %s79
    %p81 = scmp.eq.s32.totalorder %s15, 0
    %p82 = por %p80, %p81
    %s83 = ssub.s32 %s16, %s28
    %p84 = scmp.eq.s32.totalorder %s83, 0
    %s86 = sadd.s32 %s85, 1
    %s87 = scalar_select %p84, %s85, %s86
    %p90 = pneg %p84
    %p91 = scmp.eq.s32.totalorder %s9, 1
    %p92 = por %p90, %p91
    %p93 = scmp.ne.s32.totalorder %s85, %s88
    %p94 = scmp.eq.s32.totalorder %s9, 0
    %p95 = por %p93, %p94
    %p96 = scmp.ne.s32.totalorder %s85, %s88
    %p97 = scmp.eq.s32.totalorder %s14, 1
    %p98 = por %p96, %p97
    %p99 = scmp.ne.s32.totalorder %s88, %s89
    %p100 = scmp.eq.s32.totalorder %s14, 0
    %p101 = por %p99, %p100
    %p102 = scmp.ne.s32.totalorder %s88, %s89
    %p103 = scmp.eq.s32.totalorder %s15, 1
    %p104 = por %p102, %p103
    %p106 = scmp.ne.s32.totalorder %s89, %s105
    %p107 = scmp.eq.s32.totalorder %s15, 0
    %p108 = por %p106, %p107
    %s109 = ssub.s32 %s16, %s28
    %s110 = ssub.s32 %s17, %s24
    %s111 = sor.u32 %s109, %s110
    %p112 = scmp.eq.s32.totalorder %s111, 0
    %s114 = sadd.s32 %s113, 1
    %s115 = scalar_select %p112, %s113, %s114
    %p118 = pneg %p112
    %p119 = scmp.eq.s32.totalorder %s9, 1
    %p120 = por %p118, %p119
    %p121 = scmp.ne.s32.totalorder %s113, %s116
    %p122 = scmp.eq.s32.totalorder %s9, 0
    %p123 = por %p121, %p122
    %p124 = scmp.ne.s32.totalorder %s113, %s116
    %p125 = scmp.eq.s32.totalorder %s14, 1
    %p126 = por %p124, %p125
    %p127 = scmp.ne.s32.totalorder %s116, %s117
    %p128 = scmp.eq.s32.totalorder %s14, 0
    %p129 = por %p127, %p128
    %p130 = scmp.ne.s32.totalorder %s116, %s117
    %p131 = scmp.eq.s32.totalorder %s15, 1
    %p132 = por %p130, %p131
    %p134 = scmp.ne.s32.totalorder %s117, %s133
    %p135 = scmp.eq.s32.totalorder %s15, 0
    %p136 = por %p134, %p135
    %p137 = scmp.le.s32.totalorder 1, %s9
    %p138 = scmp.lt.s32.totalorder %s9, 3
    %p139 = pnand %p137, %p138
    %p140 = pneg %p139
    // Predicated region
    $region9: #{richards_sigmoid.1} parent=5 // pred_check
      _
    $region10: #{richards_sigmoid.1} parent=5 // pred_check_branch
      %142 = sbr.rel (%p139) target = $region12
    $region11: #{richards_sigmoid.1} parent=5 // pred_region
      %s143 = ssub.s32 %s9, 1
      // Predicated region
      $region13: #{richards_sigmoid.1} parent=11 // pred_check
        %p144 = pneg %p75
      $region14: #{richards_sigmoid.1} parent=11 // pred_check_branch
        %146 = sbr.rel (%p144) target = $region16
      $region15: #{richards_sigmoid.1} parent=11 // pred_region
        %p147 = scmp.lt.s32.totalorder %s18, 0
        %s148 = scalar_select %p147, %s18, 0
        %s149 = smul.addr %s148, 8
        %s150 = scalar_lea.vmem %s1, %s149
      $region16: #{richards_sigmoid.1} parent=11 // pred_fallthru
        _
      // Predicated region
      $region17: #{richards_sigmoid.1} parent=11 // pred_check
        %p151 = pneg %p101
      $region18: #{richards_sigmoid.1} parent=11 // pred_check_branch
        %153 = sbr.rel (%p151) target = $region20
      $region19: #{richards_sigmoid.1} parent=11 // pred_region
        %p154 = scmp.lt.s32.totalorder %s18, 0
        %s155 = scalar_select %p154, %s18, 0
        %s156 = smul.addr %s155, 8
        %s157 = scalar_lea.vmem %s2, %s156
      $region20: #{richards_sigmoid.1} parent=11 // pred_fallthru
        _
    $region12: #{richards_sigmoid.1} parent=5 // pred_fallthru
      _
    %p158 = scmp.lt.s32.totalorder %s9, 2
    // Predicated region
    $region21: #{richards_sigmoid.1} parent=5 // pred_check
      %p159 = pneg %p158
    $region22: #{richards_sigmoid.1} parent=5 // pred_check_branch
      %161 = sbr.rel (%p159) target = $region24
    $region23: #{richards_sigmoid.1} parent=5 // pred_region
      // Predicated region
      $region25: #{richards_sigmoid.1} parent=23 // pred_check
        %p162 = pneg %p43
      $region26: #{richards_sigmoid.1} parent=23 // pred_check_branch
        %164 = sbr.rel (%p162) target = $region28
      $region27: #{richards_sigmoid.1} parent=23 // pred_region
        %p165 = scmp.lt.s32.totalorder %s16, 0
        %s166 = scalar_select %p165, %s16, 0
        %p167 = scmp.lt.s32.totalorder %s17, 1
        %s168 = scalar_select %p167, %s17, 1
        %s169 = smul.addr %s166, 2
        %s170 = sadd.s32 %s168, %s169
        %s171 = smul.addr %s170, 8
        %s172 = scalar_lea.vmem %s0, %s171
      $region28: #{richards_sigmoid.1} parent=23 // pred_fallthru
        _
    $region24: #{richards_sigmoid.1} parent=5 // pred_fallthru
      _
    %p173 = scmp.le.s32.totalorder 1, %s9
    %p174 = scmp.lt.s32.totalorder %s9, 3
    %p175 = pnand %p173, %p174
    %p176 = pneg %p175
    // Predicated region
    $region29: #{richards_sigmoid.1} parent=5 // pred_check
      _
    $region30: #{richards_sigmoid.1} parent=5 // pred_check_branch
      %178 = sbr.rel (%p175) target = $region32
    $region31: #{richards_sigmoid.1} parent=5 // pred_region
      %s179 = ssub.s32 %s9, 1
      %p180 = scmp.lt.s32.totalorder %s18, 0
      %s181 = scalar_select %p180, %s18, 0
      %p182 = scmp.lt.s32.totalorder %s19, 1
      %s183 = scalar_select %p182, %s19, 1
      %s184 = smul.addr %s181, 2
      %s185 = sadd.s32 %s183, %s184
      %s186 = smul.addr %s185, 8
      %s187 = scalar_lea.vmem %s0, %s186
      %p188 = pneg %p49
      %p189 = pneg %p46
      %p190 = scmp.lt.s32.totalorder %s18, 0
      %s191 = scalar_select %p190, %s18, 0
      %s192 = smul.addr %s191, 8
      %s193 = scalar_lea.vmem %s1, %s192
      %p194 = pneg %p75
      %p195 = pneg %p72
      %p196 = scmp.lt.s32.totalorder %s18, 0
      %s197 = scalar_select %p196, %s18, 0
      %s198 = smul.addr %s197, 8
      %s199 = scalar_lea.vmem %s2, %s198
      %p200 = pneg %p101
      %p201 = pneg %p98
      %p202 = pneg %p129
      %p203 = pneg %p126
      %p204 = scmp.lt.s32.totalorder %s18, 0
      %s205 = scalar_select %p204, %s18, 0
      %p206 = scmp.lt.s32.totalorder %s19, 1
      %s207 = scalar_select %p206, %s19, 1
      %s208 = smul.addr %s205, 2
      %s209 = sadd.s32 %s207, %s208
      %s210 = smul.addr %s209, 8
      %s211 = scalar_lea.vmem %s3, %s210
      %p212 = scmp.lt.s32.totalorder %s18, 0
      %s213 = scalar_select %p212, %s18, 0
      %p214 = scmp.lt.s32.totalorder %s19, 1
      %s215 = scalar_select %p214, %s19, 1
      %s216 = smul.addr %s213, 2
      %s217 = sadd.s32 %s215, %s216
      %s218 = smul.addr %s217, 8
      %s219 = scalar_lea.vmem %s0, %s218
      %p220 = scmp.lt.s32.totalorder %s18, 0
      %s221 = scalar_select %p220, %s18, 0
      %s222 = smul.addr %s221, 8
      %s223 = scalar_lea.vmem %s1, %s222
      %p224 = scmp.lt.s32.totalorder %s18, 0
      %s225 = scalar_select %p224, %s18, 0
      %s226 = smul.addr %s225, 8
      %s227 = scalar_lea.vmem %s2, %s226
      %p228 = scmp.lt.s32.totalorder %s18, 0
      %s229 = scalar_select %p228, %s18, 0
      %p230 = scmp.lt.s32.totalorder %s19, 1
      %s231 = scalar_select %p230, %s19, 1
      %s232 = smul.addr %s229, 2
      %s233 = sadd.s32 %s231, %s232
      %s234 = smul.addr %s233, 8
      %s235 = scalar_lea.vmem %s3, %s234
      %v236 = vld [vmem:[%s219] sm:$0xff]
      %v237 = vmax.f32 %v236, 0.0
      %v238 = vmin.f32 %v237, 1.0
      %v239 = vld [vmem:[%s227] sm:$0xff]
      %241 = vset.pattern.permute.xlu0 0
      %242 = vperm.xlu0 %241, %v239
      %v243 = vpop.permute.xlu0 %242
      %v245 = vmul.f32 %v243, %v238
      %v246 = vmul.f32 %v245, 1.442695
      %v247 = vpow.pop %v246
      %v248 = vld [vmem:[%s223] sm:$0xff]
      %250 = vset.pattern.permute.xlu0 0
      %251 = vperm.xlu0 %250, %v248
      %v252 = vpop.permute.xlu0 %251
      %v254 = vmul.f32 %v252, %v247
      %v255 = vtanh.pop %v254
      %v256 = vmul.f32 %v255, 0.5
      %v257 = vadd.f32 %v256, 0.5
      %258 = vst [vmem:[%s235] sm:$0xff] %v257
      %p259 = scmp.lt.s32.totalorder %s18, 0
      %s260 = scalar_select %p259, %s18, 0
      %p261 = scmp.lt.s32.totalorder %s19, 1
      %s262 = scalar_select %p261, %s19, 1
      %s263 = smul.addr %s260, 2
      %s264 = sadd.s32 %s262, %s263
      %s265 = smul.addr %s264, 8
      %s266 = scalar_lea.vmem %s3, %s265
      // Predicated region
      $region33: #{richards_sigmoid.1} parent=31 // pred_check
        %p267 = pneg %p126
      $region34: #{richards_sigmoid.1} parent=31 // pred_check_branch
        %269 = sbr.rel (%p267) target = $region36
      $region35: #{richards_sigmoid.1} parent=31 // pred_region
        _
      $region36: #{richards_sigmoid.1} parent=31 // pred_fallthru
        _
    $region32: #{richards_sigmoid.1} parent=5 // pred_fallthru
      _
    %p270 = scmp.le.s32.totalorder 2, %s9
    // Predicated region
    $region37: #{richards_sigmoid.1} parent=5 // pred_check
      %p271 = pneg %p270
    $region38: #{richards_sigmoid.1} parent=5 // pred_check_branch
      %273 = sbr.rel (%p271) target = $region40
    $region39: #{richards_sigmoid.1} parent=5 // pred_region
      %s274 = ssub.s32 %s9, 2
      // Predicated region
      $region41: #{richards_sigmoid.1} parent=39 // pred_check
        %p275 = pneg %p132
      $region42: #{richards_sigmoid.1} parent=39 // pred_check_branch
        %277 = sbr.rel (%p275) target = $region44
      $region43: #{richards_sigmoid.1} parent=39 // pred_region
        %p278 = scmp.lt.s32.totalorder %s20, 0
        %s279 = scalar_select %p278, %s20, 0
        %p280 = scmp.lt.s32.totalorder %s21, 1
        %s281 = scalar_select %p280, %s21, 1
        %s282 = smul.addr %s279, 2
        %s283 = sadd.s32 %s281, %s282
        %s284 = smul.addr %s283, 8
        %s285 = scalar_lea.vmem %s3, %s284
      $region44: #{richards_sigmoid.1} parent=39 // pred_fallthru
        _
    $region40: #{richards_sigmoid.1} parent=5 // pred_fallthru
      _
  $region6: #{richards_sigmoid.1} parent=0 // loop_footer
    %s13 = sadd.s32 1, %s9
  $region7: #{richards_sigmoid.1} parent=0 // loop_footer_branch
    %8 = sbr.rel target = $region3
  $region8: #{richards_sigmoid.1} parent=0 // loop_exit
    _

</llo_original>
